<compile_context>
chip_gen: v5e
topology: v5e:2x2
jax: 0.10.0
libtpu: 0.0.40
codegen_flags: <defaults>
</compile_context>

<pallas_src>
import jax
import jax.numpy as jnp
from jax.experimental import pallas as pl
from jax.experimental.pallas import tpu as pltpu


# ---------------------------------------------------------------------------
# Kernel
# ---------------------------------------------------------------------------
def _fused_encoder_kernel(x_ref, w1_ref, b1_ref, w2_ref, b2_ref, z_ref):
    """z = relu(x @ W1 + b1) @ W2 + b2 for one batch tile, fully fused."""
    # x arrives in VMEM in its HBM dtype (f32).  Cast to the MXU compute dtype
    # here (cheap VPU work that hides under the x-tile DMA) instead of doing a
    # separate full-array astype pass in the wrapper.
    x = x_ref[...].astype(w1_ref.dtype)
    h = jnp.dot(x, w1_ref[...], preferred_element_type=jnp.float32)
    h = jnp.maximum(h + b1_ref[...], 0.0)                 # bias + ReLU in f32
    z = jnp.dot(h.astype(w2_ref.dtype), w2_ref[...],
                preferred_element_type=jnp.float32)
    z_ref[...] = (z + b2_ref[...]).astype(z_ref.dtype)


# ---------------------------------------------------------------------------
# Sizing helpers
# ---------------------------------------------------------------------------
def _round_up(n, m):
    return ((n + m - 1) // m) * m


def _vmem_budget_bytes():
    """Scoped-VMEM request: ~75% of physical VMEM (headroom for compiler scratch)."""
    cap = None
    try:
        cap = getattr(pltpu.get_tpu_info(), "vmem_capacity_bytes", None)
    except Exception:
        cap = None
    if not cap:
        try:
            kind = jax.devices()[0].device_kind.lower()
        except Exception:
            kind = ""
        if "v5" in kind or "v6" in kind:
            cap = 128 << 20          # v5e / v6e physical VMEM
        else:
            cap = 64 << 20           # v7x physical VMEM (conservative default)
    return int(cap) * 3 // 4         # ~48 MiB on v7x, ~96 MiB on v5e/v6e


def _choose_tile(B, d_in, h, z, vmem_budget, out_bytes):
    """Largest batch tile that fits the VMEM budget (then sane caps)."""
    # Per batch row of the tile (conservative, all live at once):
    #   x block f32, double-buffered        : 2 * d_in * 4
    #   out block, double-buffered          : 2 * z * out_bytes
    #   in-kernel temps: x bf16, h f32/bf16, z f32
    per_row = (2 * d_in * 4) + (2 * z * out_bytes) + (d_in * 2) + (h * 6) + (z * 4)
    # Weights / biases: grid-invariant but budget two pipeline buffers each.
    weights = 2 * (d_in * h * 2 + h * 4 + h * z * 2 + z * 4)
    avail = max(vmem_budget - weights - (2 << 20), 1 << 20)

    tile = int(avail // per_row)
    tile = min(tile, 8192)                       # per-step DMA >> 0.35 us step overhead
    if B >= 512:
        # Keep >= 2 grid steps so "parallel" can shard across v7x's 2 TCs.
        tile = min(tile, _round_up((B + 1) // 2, 16))
    tile = min(tile, _round_up(B, 16))           # never larger than the batch
    return max(16, _round_up(tile, 16))          # multiple of 16 (bf16 sublanes)


# ---------------------------------------------------------------------------
# Wrapper
# ---------------------------------------------------------------------------
def mdec_encoder_forward(x, w1, b1, w2, b2, *, compute_dtype=jnp.bfloat16,
                         out_dtype=None, batch_tile=None):
    """Pallas-fused MDEC_encoder forward.

    x : (B, D_in)   float32 (or bf16)
    w1: (D_in, H)   float32   (transposed PyTorch weight)
    b1: (1, H)      float32
    w2: (H, Z)      float32
    b2: (1, Z)      float32
    returns z: (B, Z) in `out_dtype` (default: x.dtype)
    """
    B, D_in = x.shape
    H = w1.shape[1]
    Z = w2.shape[1]
    out_dtype = x.dtype if out_dtype is None else out_dtype
    out_bytes = jnp.dtype(out_dtype).itemsize

    vmem_budget = _vmem_budget_bytes()
    if batch_tile is None:
        tile = _choose_tile(B, D_in, H, Z, vmem_budget, out_bytes)
    else:
        tile = max(16, _round_up(int(batch_tile), 16))
        tile = min(tile, _round_up(B, 16))
    grid_m = pl.cdiv(B, tile)

    # Weights/biases: tiny and grid-invariant -> one-time cast in the wrapper
    # is negligible; they are DMA'd once and stay resident across the grid.
    w1c = jnp.asarray(w1, compute_dtype)
    w2c = jnp.asarray(w2, compute_dtype)
    b1f = jnp.asarray(b1, jnp.float32).reshape(1, H)
    b2f = jnp.asarray(b2, jnp.float32).reshape(1, Z)

    grid_spec = pl.GridSpec(
        grid=(grid_m,),
        in_specs=[
            pl.BlockSpec((tile, D_in), lambda i: (i, 0)),   # x tile (f32 in HBM/VMEM)
            pl.BlockSpec((D_in, H), lambda i: (0, 0)),      # W1 (resident)
            pl.BlockSpec((1, H), lambda i: (0, 0)),         # b1
            pl.BlockSpec((H, Z), lambda i: (0, 0)),         # W2 (resident)
            pl.BlockSpec((1, Z), lambda i: (0, 0)),         # b2
        ],
        out_specs=pl.BlockSpec((tile, Z), lambda i: (i, 0)),
    )

    return pl.pallas_call(
        _fused_encoder_kernel,
        out_shape=jax.ShapeDtypeStruct((B, Z), out_dtype),
        grid_spec=grid_spec,
        compiler_params=pltpu.CompilerParams(
            dimension_semantics=("parallel",),
            vmem_limit_bytes=vmem_budget,
        ),
    )(x, w1c, b1f, w2c, b2f)


# ---------------------------------------------------------------------------
# Parameter init (PyTorch nn.Linear default: U(-1/sqrt(fan_in), +1/sqrt(fan_in)))
# ---------------------------------------------------------------------------
def init_mdec_encoder_params(key, input_dim, hidden, z_dim, n_clusters):
    k1, k2, k3, k4, k5 = jax.random.split(key, 5)

    bound1 = 1.0 / jnp.sqrt(jnp.float32(input_dim))
    w1 = jax.random.uniform(k1, (input_dim, hidden), jnp.float32, -bound1, bound1)
    b1 = jax.random.uniform(k2, (1, hidden), jnp.float32, -bound1, bound1)

    bound2 = 1.0 / jnp.sqrt(jnp.float32(hidden))
    w2 = jax.random.uniform(k3, (hidden, z_dim), jnp.float32, -bound2, bound2)
    b2 = jax.random.uniform(k4, (1, z_dim), jnp.float32, -bound2, bound2)

    # Cluster centroids `mu` (unused in forward, kept for structural parity).
    mu = jax.random.normal(k5, (n_clusters, z_dim), jnp.float32)
    return w1, b1, w2, b2, mu


if __name__ == "__main__":
    # Small shapes consistent with the module's forward:
    #   batch=12 (not a multiple of the tile -> exercises cdiv + boundary
    #   masking), input_dim=64, encodeLayer=[32], z_dim=16, n_clusters=10.
    B, D_IN, HIDDEN, Z_DIM, N_CLUSTERS = 12, 64, 32, 16, 10

    key = jax.random.PRNGKey(0)
    kx, kp = jax.random.split(key)
    x = jax.random.normal(kx, (B, D_IN), jnp.float32)
    w1, b1, w2, b2, mu = init_mdec_encoder_params(kp, D_IN, HIDDEN, Z_DIM, N_CLUSTERS)

    z = mdec_encoder_forward(x, w1, b1, w2, b2)
    z = jax.block_until_ready(z)

    # Pure-JAX reference mirroring the kernel's bf16-operand / f32-accumulate path.
    xb, w1b, w2b = (a.astype(jnp.bfloat16) for a in (x, w1, w2))
    h_ref = jnp.maximum(
        jnp.dot(xb, w1b, preferred_element_type=jnp.float32) + b1, 0.0)
    z_ref = jnp.dot(h_ref.astype(jnp.bfloat16), w2b,
                    preferred_element_type=jnp.float32) + b2

    assert z.shape == (B, Z_DIM)
    assert z.dtype == x.dtype
    assert jnp.allclose(z, z_ref, atol=2e-2, rtol=2e-2), "mismatch vs reference"

    print("KERNEL_OK")
</pallas_src>

<mosaic_0001>
module attributes {stable_mosaic.version = 11 : i64} {
  func.func @_fused_encoder_kernel(%arg0: i32, %arg1: memref<16x64xf32, #tpu.memory_space<vmem>>, %arg2: memref<64x32xbf16, #tpu.memory_space<vmem>>, %arg3: memref<1x32xf32, #tpu.memory_space<vmem>>, %arg4: memref<32x16xbf16, #tpu.memory_space<vmem>>, %arg5: memref<1x16xf32, #tpu.memory_space<vmem>>, %arg6: memref<16x16xf32, #tpu.memory_space<vmem>>) attributes {dimension_semantics = [#tpu.dimension_semantics<parallel>], iteration_bounds = array<i64: 1>, scalar_prefetch = 0 : i64, scratch_operands = 0 : i64, tpu.core_type = #tpu.core_type<tc>, window_params = [{transform_indices = @transform_0, window_bounds = array<i64: 16, 64>}, {pipeline_mode = #tpu.pipeline_mode<synchronous>, transform_indices = @transform_1, window_bounds = array<i64: 64, 32>}, {pipeline_mode = #tpu.pipeline_mode<synchronous>, transform_indices = @transform_2, window_bounds = array<i64: 1, 32>}, {pipeline_mode = #tpu.pipeline_mode<synchronous>, transform_indices = @transform_3, window_bounds = array<i64: 32, 16>}, {pipeline_mode = #tpu.pipeline_mode<synchronous>, transform_indices = @transform_4, window_bounds = array<i64: 1, 16>}, {transform_indices = @transform_5, window_bounds = array<i64: 16, 16>}]} {
    %c0 = arith.constant 0 : index
    %c0_0 = arith.constant 0 : index
    %0 = vector.load %arg1[%c0, %c0_0] : memref<16x64xf32, #tpu.memory_space<vmem>>, vector<16x64xf32>
    %1 = arith.truncf %0 : vector<16x64xf32> to vector<16x64xbf16>
    %c0_1 = arith.constant 0 : index
    %c0_2 = arith.constant 0 : index
    %2 = vector.load %arg2[%c0_1, %c0_2] : memref<64x32xbf16, #tpu.memory_space<vmem>>, vector<64x32xbf16>
    %cst = arith.constant dense<0.000000e+00> : vector<16x32xf32>
    %3 = tpu.matmul %1, %2, %cst {dimension_numbers = #tpu.dot_dimension_numbers<[1], [0], [0], [1], [0, 0, 1, 1], [], []>} : vector<16x64xbf16>, vector<64x32xbf16>, vector<16x32xf32> -> vector<16x32xf32>
    %c0_3 = arith.constant 0 : index
    %c0_4 = arith.constant 0 : index
    %4 = vector.load %arg3[%c0_3, %c0_4] : memref<1x32xf32, #tpu.memory_space<vmem>>, vector<1x32xf32>
    %5 = vector.broadcast %4 : vector<1x32xf32> to vector<16x32xf32>
    %6 = arith.addf %3, %5 : vector<16x32xf32>
    %cst_5 = arith.constant 0.000000e+00 : f32
    %7 = vector.broadcast %cst_5 : f32 to vector<16x32xf32>
    %8 = arith.maximumf %6, %7 : vector<16x32xf32>
    %9 = arith.truncf %8 : vector<16x32xf32> to vector<16x32xbf16>
    %c0_6 = arith.constant 0 : index
    %c0_7 = arith.constant 0 : index
    %10 = vector.load %arg4[%c0_6, %c0_7] : memref<32x16xbf16, #tpu.memory_space<vmem>>, vector<32x16xbf16>
    %cst_8 = arith.constant dense<0.000000e+00> : vector<16x16xf32>
    %11 = tpu.matmul %9, %10, %cst_8 {dimension_numbers = #tpu.dot_dimension_numbers<[1], [0], [0], [1], [0, 0, 1, 1], [], []>} : vector<16x32xbf16>, vector<32x16xbf16>, vector<16x16xf32> -> vector<16x16xf32>
    %c0_9 = arith.constant 0 : index
    %c0_10 = arith.constant 0 : index
    %12 = vector.load %arg5[%c0_9, %c0_10] : memref<1x16xf32, #tpu.memory_space<vmem>>, vector<1x16xf32>
    %13 = vector.broadcast %12 : vector<1x16xf32> to vector<16x16xf32>
    %14 = arith.addf %11, %13 : vector<16x16xf32>
    %c0_11 = arith.constant 0 : index
    %c0_12 = arith.constant 0 : index
    %15 = vector.load %arg6[%c0_11, %c0_12] : memref<16x16xf32, #tpu.memory_space<vmem>>, vector<16x16xf32>
    tpu.vector_store %arg6[%c0_11, %c0_12], %14 {strides = array<i32>} : memref<16x16xf32, #tpu.memory_space<vmem>>, vector<16x16xf32>,
    return
  }
  func.func @transform_0(%arg0: i32) -> (i32, i32) {
    %c0_i32 = arith.constant 0 : i32
    %c0_i32_0 = arith.constant 0 : i32
    return %arg0, %c0_i32 : i32, i32
  }
  func.func @transform_1(%arg0: i32) -> (i32, i32) {
    %c0_i32 = arith.constant 0 : i32
    %c0_i32_0 = arith.constant 0 : i32
    %c0_i32_1 = arith.constant 0 : i32
    return %c0_i32, %c0_i32_0 : i32, i32
  }
  func.func @transform_2(%arg0: i32) -> (i32, i32) {
    %c0_i32 = arith.constant 0 : i32
    %c0_i32_0 = arith.constant 0 : i32
    %c0_i32_1 = arith.constant 0 : i32
    return %c0_i32, %c0_i32_0 : i32, i32
  }
  func.func @transform_3(%arg0: i32) -> (i32, i32) {
    %c0_i32 = arith.constant 0 : i32
    %c0_i32_0 = arith.constant 0 : i32
    %c0_i32_1 = arith.constant 0 : i32
    return %c0_i32, %c0_i32_0 : i32, i32
  }
  func.func @transform_4(%arg0: i32) -> (i32, i32) {
    %c0_i32 = arith.constant 0 : i32
    %c0_i32_0 = arith.constant 0 : i32
    %c0_i32_1 = arith.constant 0 : i32
    return %c0_i32, %c0_i32_0 : i32, i32
  }
  func.func @transform_5(%arg0: i32) -> (i32, i32) {
    %c0_i32 = arith.constant 0 : i32
    %c0_i32_0 = arith.constant 0 : i32
    return %arg0, %c0_i32 : i32, i32
  }
}

</mosaic_0001>

<llo_original>
// kernel: tpu_custom_call.1
$region0: #{tpu_custom_call.1}
  #allocation0 [shape = 'u32[]', space=smem, size = 0x4, offset = 0x4, fixed_abs, tag = 'smem constant byte address 0x4 - core index']
  #allocation1 [shape = 'u32[72,128]{1,0:T(1,128)}', space=vmem, size = 0x9000, scoped, tag = 'internal scratch']
  %s0 = inlined_call_operand.vmem [shape: f32[12,64], index: 0, kind: input, shape index: {}]
  %s1 = inlined_call_operand.vmem [shape: bf16[64,32], index: 1, kind: input, shape index: {}]
  %s2 = inlined_call_operand.vmem [shape: f32[1,32], index: 2, kind: input, shape index: {}]
  %s3 = inlined_call_operand.vmem [shape: bf16[32,16], index: 3, kind: input, shape index: {}]
  %s4 = inlined_call_operand.vmem [shape: f32[1,16], index: 4, kind: input, shape index: {}]
  %s5 = inlined_call_operand.hbm [shape: f32[12,16], index: 5, kind: output, shape index: {}]
  %s6 = sld [smem:[#allocation0]]
  $region30: #{tpu_custom_call.1} parent=0
    _
  %s8 = ssub.s32 1, %s6
  %s9 = scalar_select 0, %s8, %s6
  $region1: #{tpu_custom_call.1} parent=0
    #allocation2 [shape = 'u8[8192]{0}', space=vmem, size = 0x2000, scoped, tag = 'output window, operand 0, single buffered']
    #allocation3 [shape = 's32[1]{0}', space=sflag, size = 0x4, scoped, tag = 'scoped memory for tpu_custom_call.1']
    %10 = vsyncpa [#allocation3], 0
    // Predicated region
    $region2: #{tpu_custom_call.1} parent=1 // pred_check
      _
    $region3: #{tpu_custom_call.1} parent=1 // pred_check_branch
      %12 = sbr.rel (0) target = $region5
    $region4: #{tpu_custom_call.1} parent=1 // pred_region
      _
    $region5: #{tpu_custom_call.1} parent=1 // pred_fallthru
      _
    // Predicated region
    $region6: #{tpu_custom_call.1} parent=1 // pred_check
      _
    $region7: #{tpu_custom_call.1} parent=1 // pred_check_branch
      %14 = sbr.rel (0) target = $region9
    $region8: #{tpu_custom_call.1} parent=1 // pred_region
      _
    $region9: #{tpu_custom_call.1} parent=1 // pred_fallthru
      _
    // Predicated region
    $region10: #{tpu_custom_call.1} parent=1 // pred_check
      _
    $region11: #{tpu_custom_call.1} parent=1 // pred_check_branch
      %16 = sbr.rel (0) target = $region13
    $region12: #{tpu_custom_call.1} parent=1 // pred_region
      _
    $region13: #{tpu_custom_call.1} parent=1 // pred_fallthru
      _
    // Predicated region
    $region14: #{tpu_custom_call.1} parent=1 // pred_check
      _
    $region15: #{tpu_custom_call.1} parent=1 // pred_check_branch
      %18 = sbr.rel (0) target = $region17
    $region16: #{tpu_custom_call.1} parent=1 // pred_region
      _
    $region17: #{tpu_custom_call.1} parent=1 // pred_fallthru
      _
    // Predicated region
    $region18: #{tpu_custom_call.1} parent=1 // pred_check
      _
    $region19: #{tpu_custom_call.1} parent=1 // pred_check_branch
      %20 = sbr.rel (0) target = $region21
    $region20: #{tpu_custom_call.1} parent=1 // pred_region
      _
    $region21: #{tpu_custom_call.1} parent=1 // pred_fallthru
      _
    %v22 = vld [vmem:[%s0] sm:$0xff]
    %v23 = vld [vmem:[%s0 + $0x8] sm:$0xff]
    %v24 = vpack.c.bf16 %v23, %v22
    %v25 = vld [vmem:[%s1] sm:$0xf]
    %v26 = vld [vmem:[%s1 + $0x4] sm:$0xf]
    %v27 = vld [vmem:[%s1 + $0x8] sm:$0xf]
    %v28 = vld [vmem:[%s1 + $0xc] sm:$0xf]
    %v29 = vld [vmem:[%s1 + $0x10] sm:$0xf]
    %v30 = vld [vmem:[%s1 + $0x14] sm:$0xf]
    %v31 = vld [vmem:[%s1 + $0x18] sm:$0xf]
    %v32 = vld [vmem:[%s1 + $0x1c] sm:$0xf]
    %v33 = vld [vmem:[%s2] sm:$0x1]
    %v35 = vperm.slane %v33, 0
    %v45 = vunpack.c.l.b16 %v25
    %v46 = vunpack.c.l.b16 %v26
    %v47 = vunpack.c.l.b16 %v27
    %v48 = vunpack.c.l.b16 %v28
    %v49 = vunpack.c.l.b16 %v29
    %v50 = vunpack.c.l.b16 %v30
    %v51 = vunpack.c.l.b16 %v31
    %v52 = vunpack.c.l.b16 %v32
    %v53 = vpack.c.b16 %v46, %v45
    %v54 = vpack.c.b16 %v48, %v47
    %v55 = vpack.c.b16 %v50, %v49
    %v56 = vpack.c.b16 %v52, %v51
    %vm61 = vcmask 523264
    %v63 = vsel %vm61, %v24, 0
    %65 = vmatpush.bf16.msra.mxu0 0
    %66 = vmatpush.bf16.msra.mxu0 0
    %67 = vmatpush.bf16.msra.mxu0 0
    %68 = vmatpush.bf16.msra.mxu0 0
    %69 = vmatpush.bf16.msra.mxu0 %v56
    %70 = vmatpush.bf16.msra.mxu0 %v55
    %71 = vmatpush.bf16.msra.mxu0 %v54
    %72 = vmatpush.bf16.msra.mxu0 %v53
    %73 = vmatmul.bf16.gmra.mxu0 %v63
    %v74 = vpop.f32.mrf.mxu0
    %v75 = vadd.f32 %v35, %v74
    %v76 = vpop.f32.mrf.mxu0
    %v77 = vadd.f32 %v35, %v76
    %78 = vdwg.mxu0
    %v79 = vmax.f32 %v75, 0.0
    %v80 = vmax.f32 %v77, 0.0
    %v81 = vpack.c.bf16 %v80, %v79
    %v82 = vld [vmem:[%s3] sm:$0xf]
    %v83 = vld [vmem:[%s3 + $0x4] sm:$0xf]
    %v84 = vld [vmem:[%s3 + $0x8] sm:$0xf]
    %v85 = vld [vmem:[%s3 + $0xc] sm:$0xf]
    %v86 = vld [vmem:[%s4] sm:$0x1]
    %v88 = vperm.slane %v86, 0
    %v94 = vunpack.c.l.b16 %v82
    %v95 = vunpack.c.l.b16 %v83
    %v96 = vunpack.c.l.b16 %v84
    %v97 = vunpack.c.l.b16 %v85
    %v98 = vpack.c.b16 %v95, %v94
    %v99 = vpack.c.b16 %v97, %v96
    %vm102 = vcmask 261120
    %v104 = vsel %vm102, %v81, 0
    %106 = vmatpush.bf16.msra.mxu0 0
    %107 = vmatpush.bf16.msra.mxu0 0
    %108 = vmatpush.bf16.msra.mxu0 0
    %109 = vmatpush.bf16.msra.mxu0 0
    %110 = vmatpush.bf16.msra.mxu0 0
    %111 = vmatpush.bf16.msra.mxu0 0
    %112 = vmatpush.bf16.msra.mxu0 %v99
    %113 = vmatpush.bf16.msra.mxu0 %v98
    %114 = vmatmul.bf16.gmra.mxu0 %v104
    %v115 = vpop.f32.mrf.mxu0
    %v116 = vadd.f32 %v88, %v115
    %v117 = vpop.f32.mrf.mxu0
    %v118 = vadd.f32 %v88, %v117
    %119 = vdwg.mxu0
    %vm120 = vcmask 130048
    %121 = vst.msk [vmem:[#allocation2] sm:$0xff] %vm120, %v116
    %122 = vst.msk [vmem:[#allocation2 + $0x8] sm:$0xff] %vm120, %v118
    // Predicated region
    $region22: #{tpu_custom_call.1} parent=1 // pred_check
      _
    $region23: #{tpu_custom_call.1} parent=1 // pred_check_branch
      %124 = sbr.rel (0) target = $region25
    $region24: #{tpu_custom_call.1} parent=1 // pred_region
      %126 = vsyncadd [#allocation3], 0
      %s127 = sshll.u32 [#allocation2], 4
      %s128 = int_to_ptr.vmem [resolvable:$true] %s127
      %s129 = sshll.u32 %s5, 4
      %s130 = int_to_ptr.hbm [resolvable:$true] %s129
      %135 = dma.vmem_to_hbm [thread:$0]  %s128, 256, %s130, [#allocation3], 128, 128, 8
    $region25: #{tpu_custom_call.1} parent=1 // pred_fallthru
      _
    // Predicated region
    $region26: #{tpu_custom_call.1} parent=1 // pred_check
      _
    $region27: #{tpu_custom_call.1} parent=1 // pred_check_branch
      %137 = sbr.rel (0) target = $region29
    $region28: #{tpu_custom_call.1} parent=1 // pred_region
      %139 = dma.done [#allocation3], 256
    $region29: #{tpu_custom_call.1} parent=1 // pred_fallthru
      _
    %140 = vsyncpa [#allocation3], 1

</llo_original>
